<compile_context>
chip_gen: v7x
topology: tpu7x:2x2x1
jax: 0.10.0
libtpu: 0.0.40
codegen_flags: <defaults>
</compile_context>

<pallas_src>
import functools

import jax
import jax.numpy as jnp
from jax.experimental import pallas as pl
from jax.experimental.pallas import tpu as pltpu


def _attn_map_kernel(q_ref, kc_ref, wq_ref, bq_ref, wk_ref, bk_ref, *rest,
                     num_heads, head_dim, normalize_fact, has_mask):
    """One grid step == one batch element.

    q_ref  : (1, Q, Dq)        queries
    kc_ref : (1, Dq, HW)       feature map, channels-first, spatial flattened
    wq_ref : (Dq, Dh)          q_linear weight, stored (in, out)
    bq_ref : (1, Dh)
    wk_ref : (Dh, Dq)          k_linear weight, PyTorch (out, in) layout
    bk_ref : (Dh, 1)
    mask   : (1, 1, HW) f32    optional, 1.0 == masked
    o_ref  : (1, Q, N*HW)      softmax weights, head-major flattened (== flatten(2))
    """
    if has_mask:
        mask_ref, o_ref = rest
    else:
        (o_ref,) = rest

    q = q_ref[0]                                   # (Q, Dq)
    kc = kc_ref[0]                                 # (Dq, HW)

    # Query projection (MXU, f32 accumulation) + bias + normalize factor.
    qp = jnp.dot(q, wq_ref[...], preferred_element_type=jnp.float32)
    qp = (qp + bq_ref[...]) * normalize_fact       # (Q, Dh)

    # Key projection == 1x1 conv: Wk @ k_chw + bk.  Lane axis stays HW (dense).
    kp = jnp.dot(wk_ref[...], kc, preferred_element_type=jnp.float32)
    kp = kp + bk_ref[...]                          # (Dh, HW)

    if has_mask:
        mrow = mask_ref[0] > 0.5                   # (1, HW) bool, broadcast over Q
        neg = jnp.finfo(jnp.float32).min

    # Per-head scaled dot products.  Concatenating head slabs along the lane
    # axis reproduces torch's flatten(2) ordering (head-major, then H, then W),
    # so a single softmax over the last axis matches the reference exactly.
    heads = []
    for n in range(num_heads):
        lo = n * head_dim
        qn = qp[:, lo:lo + head_dim]               # (Q, hd)
        kn = kp[lo:lo + head_dim, :]               # (hd, HW)
        logit_n = jnp.dot(qn, kn, preferred_element_type=jnp.float32)  # (Q, HW)
        if has_mask:
            logit_n = jnp.where(mrow, neg, logit_n)
        heads.append(logit_n)
    logits = jnp.concatenate(heads, axis=-1)       # (Q, N*HW)

    # Numerically-stable softmax over the flattened (heads * HW) axis.
    m = jnp.max(logits, axis=-1, keepdims=True)
    e = jnp.exp(logits - m)
    s = jnp.sum(e, axis=-1, keepdims=True)
    o_ref[0] = (e / s).astype(o_ref.dtype)


def cond_detr_mh_attention_map(q, k, params, num_heads, mask=None):
    """q: (B, Q, Dq); k: (B, Dq, H, W); mask: (B, H, W) bool or None.

    Returns attention weights (B, Q, num_heads, H, W), matching
    ConditionalDetrMHAttentionMap.forward (eval mode).
    """
    B, Qn, Dq = q.shape
    Bk, Dk, H, W = k.shape
    assert B == Bk and Dk == Dq
    HW = H * W
    wq, bq, wk, bk = params["wq"], params["bq"], params["wk"], params["bk"]
    Dh = wq.shape[1]
    assert Dh % num_heads == 0
    head_dim = Dh // num_heads
    normalize_fact = float(Dh / num_heads) ** (-0.5)

    # Free reshape: channels-first feature map with a lane-dense spatial axis.
    kc = k.reshape(B, Dq, HW)
    has_mask = mask is not None

    inputs = [q, kc, wq, bq, wk, bk]
    in_specs = [
        pl.BlockSpec((1, Qn, Dq), lambda b: (b, 0, 0)),
        pl.BlockSpec((1, Dq, HW), lambda b: (b, 0, 0)),
        pl.BlockSpec((Dq, Dh), lambda b: (0, 0)),   # resident across grid steps
        pl.BlockSpec((1, Dh), lambda b: (0, 0)),
        pl.BlockSpec((Dh, Dq), lambda b: (0, 0)),
        pl.BlockSpec((Dh, 1), lambda b: (0, 0)),
    ]
    if has_mask:
        inputs.append(mask.astype(jnp.float32).reshape(B, 1, HW))
        in_specs.append(pl.BlockSpec((1, 1, HW), lambda b: (b, 0, 0)))

    kernel = functools.partial(
        _attn_map_kernel,
        num_heads=num_heads,
        head_dim=head_dim,
        normalize_fact=normalize_fact,
        has_mask=has_mask,
    )

    # Advisory cost estimate for the XLA scheduler.
    flops = int(
        B * (2 * Qn * Dq * Dh            # q projection
             + 2 * HW * Dq * Dh          # k projection (1x1 conv)
             + 2 * num_heads * Qn * head_dim * HW   # per-head logits
             + 4 * Qn * num_heads * HW)  # softmax adds/muls
    )
    transcendentals = int(B * Qn * num_heads * HW)
    bytes_accessed = int(
        4 * (q.size + kc.size + wq.size + bq.size + wk.size + bk.size)
        + 4 * B * Qn * num_heads * HW
        + (4 * B * HW if has_mask else 0)
    )

    out = pl.pallas_call(
        kernel,
        out_shape=jax.ShapeDtypeStruct((B, Qn, num_heads * HW), jnp.float32),
        grid_spec=pltpu.PrefetchScalarGridSpec(
            num_scalar_prefetch=0,
            grid=(B,),
            in_specs=in_specs,
            out_specs=pl.BlockSpec((1, Qn, num_heads * HW), lambda b: (b, 0, 0)),
        ),
        compiler_params=pltpu.CompilerParams(
            dimension_semantics=("parallel",),      # megacore / v7x 2 TCs
            vmem_limit_bytes=32 * 1024 * 1024,      # explicit, safe on v5e/v6e/v7x
        ),
        cost_estimate=pl.CostEstimate(
            flops=flops,
            transcendentals=transcendentals,
            bytes_accessed=bytes_accessed,
        ),
    )(*inputs)

    return out.reshape(B, Qn, num_heads, H, W)


def init_attention_map_params(key, query_dim, hidden_dim, dtype=jnp.float32):
    """nn.Linear-style init.  Wq stored (in, out); Wk kept in PyTorch (out, in)."""
    kqw, kqb, kkw, kkb = jax.random.split(key, 4)
    bound = 1.0 / float(query_dim) ** 0.5
    wq = jax.random.uniform(kqw, (query_dim, hidden_dim), dtype, -bound, bound)
    bq = jax.random.uniform(kqb, (1, hidden_dim), dtype, -bound, bound)
    wk = jax.random.uniform(kkw, (hidden_dim, query_dim), dtype, -bound, bound)
    bk = jax.random.uniform(kkb, (hidden_dim, 1), dtype, -bound, bound)
    return {"wq": wq, "bq": bq, "wk": wk, "bk": bk}


def _reference(q, k, params, num_heads, mask=None):
    """Pure-JAX mirror of the PyTorch module (eval mode)."""
    B, Qn, Dq = q.shape
    _, _, H, W = k.shape
    wq, bq, wk, bk = params["wq"], params["bq"], params["wk"], params["bk"]
    Dh = wq.shape[1]
    hd = Dh // num_heads
    norm = float(Dh / num_heads) ** (-0.5)

    qp = jnp.dot(q, wq) + bq.reshape(1, 1, Dh)                          # (B, Q, Dh)
    kp = jnp.einsum("bchw,dc->bdhw", k, wk) + bk.reshape(1, Dh, 1, 1)   # (B, Dh, H, W)
    qh = qp.reshape(B, Qn, num_heads, hd)
    kh = kp.reshape(B, num_heads, hd, H, W)
    w = jnp.einsum("bqnc,bnchw->bqnhw", qh * norm, kh)
    if mask is not None:
        w = jnp.where(mask[:, None, None, :, :], jnp.finfo(w.dtype).min, w)
    flat = jax.nn.softmax(w.reshape(B, Qn, -1), axis=-1)
    return flat.reshape(w.shape)


if __name__ == "__main__":
    key = jax.random.PRNGKey(0)
    k_q, k_k, k_m, k_p = jax.random.split(key, 4)

    # Small shapes consistent with ConditionalDetrMHAttentionMap usage:
    # q: (batch, num_queries, query_dim); k: (batch, query_dim, H, W)
    batch, num_queries = 2, 8
    query_dim, hidden_dim, num_heads = 32, 32, 4
    H = W = 16

    q = jax.random.normal(k_q, (batch, num_queries, query_dim), jnp.float32)
    kfm = jax.random.normal(k_k, (batch, query_dim, H, W), jnp.float32)
    mask = jax.random.uniform(k_m, (batch, H, W)) < 0.2
    mask = mask.at[:, 0, 0].set(False)  # keep at least one unmasked position

    params = init_attention_map_params(k_p, query_dim, hidden_dim)

    # No-mask path.
    out = cond_detr_mh_attention_map(q, kfm, params, num_heads, mask=None)
    out = jax.block_until_ready(out)
    ref = _reference(q, kfm, params, num_heads, mask=None)
    assert out.shape == (batch, num_queries, num_heads, H, W), out.shape
    assert jnp.allclose(out, ref, atol=1e-6, rtol=1e-5), "mismatch (no mask)"

    # Masked path.
    out_m = cond_detr_mh_attention_map(q, kfm, params, num_heads, mask=mask)
    out_m = jax.block_until_ready(out_m)
    ref_m = _reference(q, kfm, params, num_heads, mask=mask)
    assert jnp.allclose(out_m, ref_m, atol=1e-6, rtol=1e-5), "mismatch (mask)"

    print("KERNEL_OK")
</pallas_src>

<mosaic_0001>
module attributes {stable_mosaic.version = 11 : i64} {
  func.func @_attn_map_kernel(%arg0: i32, %arg1: memref<1x8x32xf32, #tpu.memory_space<vmem>>, %arg2: memref<1x32x256xf32, #tpu.memory_space<vmem>>, %arg3: memref<32x32xf32, #tpu.memory_space<vmem>>, %arg4: memref<1x32xf32, #tpu.memory_space<vmem>>, %arg5: memref<32x32xf32, #tpu.memory_space<vmem>>, %arg6: memref<32x1xf32, #tpu.memory_space<vmem>>, %arg7: memref<1x8x1024xf32, #tpu.memory_space<vmem>>) attributes {dimension_semantics = [#tpu.dimension_semantics<parallel>], iteration_bounds = array<i64: 2>, scalar_prefetch = 0 : i64, scratch_operands = 0 : i64, tpu.core_type = #tpu.core_type<tc>, window_params = [{transform_indices = @transform_0, window_bounds = array<i64: 1, 8, 32>}, {transform_indices = @transform_1, window_bounds = array<i64: 1, 32, 256>}, {pipeline_mode = #tpu.pipeline_mode<synchronous>, transform_indices = @transform_2, window_bounds = array<i64: 32, 32>}, {pipeline_mode = #tpu.pipeline_mode<synchronous>, transform_indices = @transform_3, window_bounds = array<i64: 1, 32>}, {pipeline_mode = #tpu.pipeline_mode<synchronous>, transform_indices = @transform_4, window_bounds = array<i64: 32, 32>}, {pipeline_mode = #tpu.pipeline_mode<synchronous>, transform_indices = @transform_5, window_bounds = array<i64: 32, 1>}, {transform_indices = @transform_6, window_bounds = array<i64: 1, 8, 1024>}]} {
    %c0 = arith.constant 0 : index
    %c0_0 = arith.constant 0 : index
    %c0_1 = arith.constant 0 : index
    %0 = vector.load %arg1[%c0, %c0_0, %c0_1] : memref<1x8x32xf32, #tpu.memory_space<vmem>>, vector<1x8x32xf32>
    %1 = vector.shape_cast %0 : vector<1x8x32xf32> to vector<8x32xf32>
    %c0_2 = arith.constant 0 : index
    %c0_3 = arith.constant 0 : index
    %c0_4 = arith.constant 0 : index
    %2 = vector.load %arg2[%c0_2, %c0_3, %c0_4] : memref<1x32x256xf32, #tpu.memory_space<vmem>>, vector<1x32x256xf32>
    %3 = vector.shape_cast %2 : vector<1x32x256xf32> to vector<32x256xf32>
    %c0_5 = arith.constant 0 : index
    %c0_6 = arith.constant 0 : index
    %4 = vector.load %arg3[%c0_5, %c0_6] : memref<32x32xf32, #tpu.memory_space<vmem>>, vector<32x32xf32>
    %cst = arith.constant dense<0.000000e+00> : vector<8x32xf32>
    %5 = tpu.matmul %1, %4, %cst {dimension_numbers = #tpu.dot_dimension_numbers<[1], [0], [0], [1], [0, 0, 1, 1], [], []>} : vector<8x32xf32>, vector<32x32xf32>, vector<8x32xf32> -> vector<8x32xf32>
    %c0_7 = arith.constant 0 : index
    %c0_8 = arith.constant 0 : index
    %6 = vector.load %arg4[%c0_7, %c0_8] : memref<1x32xf32, #tpu.memory_space<vmem>>, vector<1x32xf32>
    %7 = vector.broadcast %6 : vector<1x32xf32> to vector<8x32xf32>
    %8 = arith.addf %5, %7 : vector<8x32xf32>
    %cst_9 = arith.constant 0.353553385 : f32
    %9 = vector.broadcast %cst_9 : f32 to vector<8x32xf32>
    %10 = arith.mulf %8, %9 : vector<8x32xf32>
    %c0_10 = arith.constant 0 : index
    %c0_11 = arith.constant 0 : index
    %11 = vector.load %arg5[%c0_10, %c0_11] : memref<32x32xf32, #tpu.memory_space<vmem>>, vector<32x32xf32>
    %cst_12 = arith.constant dense<0.000000e+00> : vector<32x256xf32>
    %12 = tpu.matmul %11, %3, %cst_12 {dimension_numbers = #tpu.dot_dimension_numbers<[1], [0], [0], [1], [0, 0, 1, 1], [], []>} : vector<32x32xf32>, vector<32x256xf32>, vector<32x256xf32> -> vector<32x256xf32>
    %c0_13 = arith.constant 0 : index
    %c0_14 = arith.constant 0 : index
    %13 = vector.load %arg6[%c0_13, %c0_14] : memref<32x1xf32, #tpu.memory_space<vmem>>, vector<32x1xf32>
    %14 = vector.broadcast %13 : vector<32x1xf32> to vector<32x256xf32>
    %15 = arith.addf %12, %14 : vector<32x256xf32>
    %16 = vector.extract_strided_slice %10 {offsets = [0, 0], sizes = [8, 8], strides = [1, 1]} : vector<8x32xf32> to vector<8x8xf32>
    %17 = vector.extract_strided_slice %15 {offsets = [0, 0], sizes = [8, 256], strides = [1, 1]} : vector<32x256xf32> to vector<8x256xf32>
    %cst_15 = arith.constant dense<0.000000e+00> : vector<8x256xf32>
    %18 = tpu.matmul %16, %17, %cst_15 {dimension_numbers = #tpu.dot_dimension_numbers<[1], [0], [0], [1], [0, 0, 1, 1], [], []>} : vector<8x8xf32>, vector<8x256xf32>, vector<8x256xf32> -> vector<8x256xf32>
    %19 = vector.extract_strided_slice %10 {offsets = [0, 8], sizes = [8, 8], strides = [1, 1]} : vector<8x32xf32> to vector<8x8xf32>
    %20 = vector.extract_strided_slice %15 {offsets = [8, 0], sizes = [8, 256], strides = [1, 1]} : vector<32x256xf32> to vector<8x256xf32>
    %cst_16 = arith.constant dense<0.000000e+00> : vector<8x256xf32>
    %21 = tpu.matmul %19, %20, %cst_16 {dimension_numbers = #tpu.dot_dimension_numbers<[1], [0], [0], [1], [0, 0, 1, 1], [], []>} : vector<8x8xf32>, vector<8x256xf32>, vector<8x256xf32> -> vector<8x256xf32>
    %22 = vector.extract_strided_slice %10 {offsets = [0, 16], sizes = [8, 8], strides = [1, 1]} : vector<8x32xf32> to vector<8x8xf32>
    %23 = vector.extract_strided_slice %15 {offsets = [16, 0], sizes = [8, 256], strides = [1, 1]} : vector<32x256xf32> to vector<8x256xf32>
    %cst_17 = arith.constant dense<0.000000e+00> : vector<8x256xf32>
    %24 = tpu.matmul %22, %23, %cst_17 {dimension_numbers = #tpu.dot_dimension_numbers<[1], [0], [0], [1], [0, 0, 1, 1], [], []>} : vector<8x8xf32>, vector<8x256xf32>, vector<8x256xf32> -> vector<8x256xf32>
    %25 = vector.extract_strided_slice %10 {offsets = [0, 24], sizes = [8, 8], strides = [1, 1]} : vector<8x32xf32> to vector<8x8xf32>
    %26 = vector.extract_strided_slice %15 {offsets = [24, 0], sizes = [8, 256], strides = [1, 1]} : vector<32x256xf32> to vector<8x256xf32>
    %cst_18 = arith.constant dense<0.000000e+00> : vector<8x256xf32>
    %27 = tpu.matmul %25, %26, %cst_18 {dimension_numbers = #tpu.dot_dimension_numbers<[1], [0], [0], [1], [0, 0, 1, 1], [], []>} : vector<8x8xf32>, vector<8x256xf32>, vector<8x256xf32> -> vector<8x256xf32>
    %28 = tpu.concatenate %18, %21, %24, %27 in 1 : vector<8x256xf32>, vector<8x256xf32>, vector<8x256xf32>, vector<8x256xf32> -> vector<8x1024xf32>
    %cst_19 = arith.constant dense<0xFF800000> : vector<8xf32>
    %29 = vector.multi_reduction <maximumf>, %28, %cst_19 [1] : vector<8x1024xf32> to vector<8xf32>
    %30 = vector.shape_cast %29 : vector<8xf32> to vector<8x1xf32>
    %31 = vector.broadcast %30 : vector<8x1xf32> to vector<8x1024xf32>
    %32 = arith.subf %28, %31 : vector<8x1024xf32>
    %33 = math.exp %32 : vector<8x1024xf32>
    %cst_20 = arith.constant dense<0.000000e+00> : vector<8xf32>
    %34 = vector.multi_reduction <add>, %33, %cst_20 [1] : vector<8x1024xf32> to vector<8xf32>
    %35 = vector.shape_cast %34 : vector<8xf32> to vector<8x1xf32>
    %36 = vector.broadcast %35 : vector<8x1xf32> to vector<8x1024xf32>
    %37 = arith.divf %33, %36 : vector<8x1024xf32>
    %c0_21 = arith.constant 0 : index
    %c0_22 = arith.constant 0 : index
    %c0_23 = arith.constant 0 : index
    %38 = vector.load %arg7[%c0_21, %c0_22, %c0_23] : memref<1x8x1024xf32, #tpu.memory_space<vmem>>, vector<1x8x1024xf32>
    %39 = vector.shape_cast %38 : vector<1x8x1024xf32> to vector<8x1024xf32>
    %40 = vector.shape_cast %37 : vector<8x1024xf32> to vector<1x8x1024xf32>
    tpu.vector_store %arg7[%c0_21, %c0_22, %c0_23], %40 {strides = array<i32>} : memref<1x8x1024xf32, #tpu.memory_space<vmem>>, vector<1x8x1024xf32>,
    return
  }
  func.func @transform_0(%arg0: i32) -> (i32, i32, i32) {
    %c0_i32 = arith.constant 0 : i32
    %c0_i32_0 = arith.constant 0 : i32
    %c0_i32_1 = arith.constant 0 : i32
    return %arg0, %c0_i32, %c0_i32_0 : i32, i32, i32
  }
  func.func @transform_1(%arg0: i32) -> (i32, i32, i32) {
    %c0_i32 = arith.constant 0 : i32
    %c0_i32_0 = arith.constant 0 : i32
    %c0_i32_1 = arith.constant 0 : i32
    return %arg0, %c0_i32, %c0_i32_0 : i32, i32, i32
  }
  func.func @transform_2(%arg0: i32) -> (i32, i32) {
    %c0_i32 = arith.constant 0 : i32
    %c0_i32_0 = arith.constant 0 : i32
    %c0_i32_1 = arith.constant 0 : i32
    return %c0_i32, %c0_i32_0 : i32, i32
  }
  func.func @transform_3(%arg0: i32) -> (i32, i32) {
    %c0_i32 = arith.constant 0 : i32
    %c0_i32_0 = arith.constant 0 : i32
    %c0_i32_1 = arith.constant 0 : i32
    return %c0_i32, %c0_i32_0 : i32, i32
  }
  func.func @transform_4(%arg0: i32) -> (i32, i32) {
    %c0_i32 = arith.constant 0 : i32
    %c0_i32_0 = arith.constant 0 : i32
    %c0_i32_1 = arith.constant 0 : i32
    return %c0_i32, %c0_i32_0 : i32, i32
  }
  func.func @transform_5(%arg0: i32) -> (i32, i32) {
    %c0_i32 = arith.constant 0 : i32
    %c0_i32_0 = arith.constant 0 : i32
    %c0_i32_1 = arith.constant 0 : i32
    return %c0_i32, %c0_i32_0 : i32, i32
  }
  func.func @transform_6(%arg0: i32) -> (i32, i32, i32) {
    %c0_i32 = arith.constant 0 : i32
    %c0_i32_0 = arith.constant 0 : i32
    %c0_i32_1 = arith.constant 0 : i32
    return %arg0, %c0_i32, %c0_i32_0 : i32, i32, i32
  }
}

</mosaic_0001>

<llo_original>
// kernel: tpu_custom_call.1
$region0: #{tpu_custom_call.1}
  #allocation0 [shape = 'u32[]', space=smem, size = 0x4, offset = 0x4, fixed_abs, tag = 'smem constant byte address 0x4 - core index']
  #allocation1 [shape = 'u32[144,128]{1,0:T(1,128)}', space=vmem, size = 0x12000, scoped, tag = 'internal scratch']
  %s0 = inlined_call_operand.hbm [shape: f32[2,8,32], index: 0, kind: input, shape index: {}]
  %s1 = inlined_call_operand.hbm [shape: f32[2,32,256], index: 1, kind: input, shape index: {}]
  %s2 = inlined_call_operand.vmem [shape: f32[32,32], index: 2, kind: input, shape index: {}]
  %s3 = inlined_call_operand.vmem [shape: f32[1,32], index: 3, kind: input, shape index: {}]
  %s4 = inlined_call_operand.hbm [shape: f32[32,32], index: 4, kind: input, shape index: {}]
  %s5 = inlined_call_operand.vmem [shape: f32[32,1], index: 5, kind: input, shape index: {}]
  %s6 = inlined_call_operand.hbm [shape: f32[2,8,1024], index: 6, kind: output, shape index: {}]
  %s7 = sld [smem:[#allocation0]]
  $region69: #{tpu_custom_call.1} parent=0
    _
  %s9 = ssub.s32 1, %s7
  %s10 = scalar_select 0, %s9, %s7
  $region1: #{tpu_custom_call.1} parent=0
    #allocation2 [shape = 'u8[8192]{0}', space=vmem, size = 0x2000, scoped, tag = 'input window, operand 0']
    #allocation3 [shape = 's32[2]{0}', space=sflag, size = 0x8, scoped, tag = 'scoped memory for tpu_custom_call.1']
    #allocation4 [shape = 's32[2]{0}', space=sflag, size = 0x8, scoped, tag = 'scoped memory for tpu_custom_call.1']
    #allocation5 [shape = 'u8[65536]{0}', space=vmem, size = 0x10000, scoped, tag = 'input window, operand 1']
    #allocation6 [shape = 's32[2]{0}', space=sflag, size = 0x8, scoped, tag = 'scoped memory for tpu_custom_call.1']
    #allocation7 [shape = 'u8[16384]{0}', space=vmem, size = 0x4000, scoped, tag = 'input window, operand 4, single buffered']
    #allocation8 [shape = 'u8[65536]{0}', space=vmem, size = 0x10000, scoped, tag = 'output window, operand 0']
    %11 = vsyncpa [#allocation3], 0
    %s12 = scalar_lea.sflag [#allocation3], 1
    %13 = vsyncpa %s12, 0
    %14 = vsyncpa [#allocation6], 0
    %s15 = scalar_lea.sflag [#allocation6], 1
    %16 = vsyncpa %s15, 0
    %17 = vsyncpa [#allocation4], 0
    %s18 = scalar_lea.sflag [#allocation4], 1
    %19 = vsyncpa %s18, 0
    loop: start=0, step=1, limit=4
    $region2: #{tpu_custom_call.1} parent=1 // loop_pre_header
      _
    $region3: #{tpu_custom_call.1} parent=1 // loop_header
      %s21 = sphi 0, %s25
      %p22 = scmp.ge.s32.totalorder %s21, 4
      %s31 = sphi 0, %s33
      %s34 = sphi 0, %s31
      %s35 = sphi 0, %s34
      %s51 = sphi 0, %s35
      %s57 = sphi 0, %s59
      %s60 = sphi 0, %s57
      %s61 = sphi 0, %s60
      %s77 = sphi 0, %s61
      %s81 = sphi 0, %s81
      %s83 = sphi 0, %s81
      %s84 = sphi 0, %s83
      %s98 = sphi 0, %s84
      %s102 = sphi 0, %s102
      %s104 = sphi 0, %s102
      %s105 = sphi 0, %s104
      %s119 = sphi 0, %s105
      %s123 = sphi 0, %s123
      %s125 = sphi 0, %s123
      %s126 = sphi 0, %s125
      %s140 = sphi 0, %s126
      %s144 = sphi 0, %s144
      %s146 = sphi 0, %s144
      %s147 = sphi 0, %s146
      %s161 = sphi 0, %s147
      %s167 = sphi 0, %s169
      %s170 = sphi 0, %s167
      %s171 = sphi 0, %s170
      %s187 = sphi 0, %s171
    $region4: #{tpu_custom_call.1} parent=1 // loop_header_branch
      %24 = sbr.rel (%p22) target = $region8
    $region5: #{tpu_custom_call.1} parent=1 // loop_body
      %s26 = ssub.s32 %s21, 1
      %s27 = ssub.s32 %s21, 2
      %s28 = sadd.s32 %s21, 1
      %s29 = ssub.s32 %s21, %s28
      %p30 = scmp.eq.s32.totalorder %s29, 0
      %s32 = sadd.s32 %s31, 1
      %s33 = scalar_select %p30, %s31, %s32
      %p36 = pneg %p30
      %p37 = scmp.eq.s32.totalorder %s21, 1
      %p38 = por %p36, %p37
      %p39 = scmp.ne.s32.totalorder %s31, %s34
      %p40 = scmp.eq.s32.totalorder %s21, 0
      %p41 = por %p39, %p40
      %p42 = scmp.ne.s32.totalorder %s31, %s34
      %p43 = scmp.eq.s32.totalorder %s26, 1
      %p44 = por %p42, %p43
      %p45 = scmp.ne.s32.totalorder %s34, %s35
      %p46 = scmp.eq.s32.totalorder %s26, 0
      %p47 = por %p45, %p46
      %p48 = scmp.ne.s32.totalorder %s34, %s35
      %p49 = scmp.eq.s32.totalorder %s27, 1
      %p50 = por %p48, %p49
      %p52 = scmp.ne.s32.totalorder %s35, %s51
      %p53 = scmp.eq.s32.totalorder %s27, 0
      %p54 = por %p52, %p53
      %s55 = ssub.s32 %s21, %s28
      %p56 = scmp.eq.s32.totalorder %s55, 0
      %s58 = sadd.s32 %s57, 1
      %s59 = scalar_select %p56, %s57, %s58
      %p62 = pneg %p56
      %p63 = scmp.eq.s32.totalorder %s21, 1
      %p64 = por %p62, %p63
      %p65 = scmp.ne.s32.totalorder %s57, %s60
      %p66 = scmp.eq.s32.totalorder %s21, 0
      %p67 = por %p65, %p66
      %p68 = scmp.ne.s32.totalorder %s57, %s60
      %p69 = scmp.eq.s32.totalorder %s26, 1
      %p70 = por %p68, %p69
      %p71 = scmp.ne.s32.totalorder %s60, %s61
      %p72 = scmp.eq.s32.totalorder %s26, 0
      %p73 = por %p71, %p72
      %p74 = scmp.ne.s32.totalorder %s60, %s61
      %p75 = scmp.eq.s32.totalorder %s27, 1
      %p76 = por %p74, %p75
      %p78 = scmp.ne.s32.totalorder %s61, %s77
      %p79 = scmp.eq.s32.totalorder %s27, 0
      %p80 = por %p78, %p79
      %s82 = sadd.s32 %s81, 1
      %p85 = scmp.eq.s32.totalorder %s21, 1
      %p86 = scmp.ne.s32.totalorder %s81, %s83
      %p87 = scmp.eq.s32.totalorder %s21, 0
      %p88 = por %p86, %p87
      %p89 = scmp.ne.s32.totalorder %s81, %s83
      %p90 = scmp.eq.s32.totalorder %s26, 1
      %p91 = por %p89, %p90
      %p92 = scmp.ne.s32.totalorder %s83, %s84
      %p93 = scmp.eq.s32.totalorder %s26, 0
      %p94 = por %p92, %p93
      %p95 = scmp.ne.s32.totalorder %s83, %s84
      %p96 = scmp.eq.s32.totalorder %s27, 1
      %p97 = por %p95, %p96
      %p99 = scmp.ne.s32.totalorder %s84, %s98
      %p100 = scmp.eq.s32.totalorder %s27, 0
      %p101 = por %p99, %p100
      %s103 = sadd.s32 %s102, 1
      %p106 = scmp.eq.s32.totalorder %s21, 1
      %p107 = scmp.ne.s32.totalorder %s102, %s104
      %p108 = scmp.eq.s32.totalorder %s21, 0
      %p109 = por %p107, %p108
      %p110 = scmp.ne.s32.totalorder %s102, %s104
      %p111 = scmp.eq.s32.totalorder %s26, 1
      %p112 = por %p110, %p111
      %p113 = scmp.ne.s32.totalorder %s104, %s105
      %p114 = scmp.eq.s32.totalorder %s26, 0
      %p115 = por %p113, %p114
      %p116 = scmp.ne.s32.totalorder %s104, %s105
      %p117 = scmp.eq.s32.totalorder %s27, 1
      %p118 = por %p116, %p117
      %p120 = scmp.ne.s32.totalorder %s105, %s119
      %p121 = scmp.eq.s32.totalorder %s27, 0
      %p122 = por %p120, %p121
      %s124 = sadd.s32 %s123, 1
      %p127 = scmp.eq.s32.totalorder %s21, 1
      %p128 = scmp.ne.s32.totalorder %s123, %s125
      %p129 = scmp.eq.s32.totalorder %s21, 0
      %p130 = por %p128, %p129
      %p131 = scmp.ne.s32.totalorder %s123, %s125
      %p132 = scmp.eq.s32.totalorder %s26, 1
      %p133 = por %p131, %p132
      %p134 = scmp.ne.s32.totalorder %s125, %s126
      %p135 = scmp.eq.s32.totalorder %s26, 0
      %p136 = por %p134, %p135
      %p137 = scmp.ne.s32.totalorder %s125, %s126
      %p138 = scmp.eq.s32.totalorder %s27, 1
      %p139 = por %p137, %p138
      %p141 = scmp.ne.s32.totalorder %s126, %s140
      %p142 = scmp.eq.s32.totalorder %s27, 0
      %p143 = por %p141, %p142
      %s145 = sadd.s32 %s144, 1
      %p148 = scmp.eq.s32.totalorder %s21, 1
      %p149 = scmp.ne.s32.totalorder %s144, %s146
      %p150 = scmp.eq.s32.totalorder %s21, 0
      %p151 = por %p149, %p150
      %p152 = scmp.ne.s32.totalorder %s144, %s146
      %p153 = scmp.eq.s32.totalorder %s26, 1
      %p154 = por %p152, %p153
      %p155 = scmp.ne.s32.totalorder %s146, %s147
      %p156 = scmp.eq.s32.totalorder %s26, 0
      %p157 = por %p155, %p156
      %p158 = scmp.ne.s32.totalorder %s146, %s147
      %p159 = scmp.eq.s32.totalorder %s27, 1
      %p160 = por %p158, %p159
      %p162 = scmp.ne.s32.totalorder %s147, %s161
      %p163 = scmp.eq.s32.totalorder %s27, 0
      %p164 = por %p162, %p163
      %s165 = ssub.s32 %s21, %s28
      %p166 = scmp.eq.s32.totalorder %s165, 0
      %s168 = sadd.s32 %s167, 1
      %s169 = scalar_select %p166, %s167, %s168
      %p172 = pneg %p166
      %p173 = scmp.eq.s32.totalorder %s21, 1
      %p174 = por %p172, %p173
      %p175 = scmp.ne.s32.totalorder %s167, %s170
      %p176 = scmp.eq.s32.totalorder %s21, 0
      %p177 = por %p175, %p176
      %p178 = scmp.ne.s32.totalorder %s167, %s170
      %p179 = scmp.eq.s32.totalorder %s26, 1
      %p180 = por %p178, %p179
      %p181 = scmp.ne.s32.totalorder %s170, %s171
      %p182 = scmp.eq.s32.totalorder %s26, 0
      %p183 = por %p181, %p182
      %p184 = scmp.ne.s32.totalorder %s170, %s171
      %p185 = scmp.eq.s32.totalorder %s27, 1
      %p186 = por %p184, %p185
      %p188 = scmp.ne.s32.totalorder %s171, %s187
      %p189 = scmp.eq.s32.totalorder %s27, 0
      %p190 = por %p188, %p189
      %p191 = scmp.le.s32.totalorder 1, %s21
      %p192 = scmp.lt.s32.totalorder %s21, 3
      %p193 = pnand %p191, %p192
      %p194 = pneg %p193
      // Predicated region
      $region9: #{tpu_custom_call.1} parent=5 // pred_check
        _
      $region10: #{tpu_custom_call.1} parent=5 // pred_check_branch
        %196 = sbr.rel (%p193) target = $region12
      $region11: #{tpu_custom_call.1} parent=5 // pred_region
        %s197 = ssub.s32 %s21, 1
        // Predicated region
        $region13: #{tpu_custom_call.1} parent=11 // pred_check
          %p198 = pneg %p94
        $region14: #{tpu_custom_call.1} parent=11 // pred_check_branch
          %200 = sbr.rel (%p198) target = $region16
        $region15: #{tpu_custom_call.1} parent=11 // pred_region
          _
        $region16: #{tpu_custom_call.1} parent=11 // pred_fallthru
          _
        // Predicated region
        $region17: #{tpu_custom_call.1} parent=11 // pred_check
          %p201 = pneg %p115
        $region18: #{tpu_custom_call.1} parent=11 // pred_check_branch
          %203 = sbr.rel (%p201) target = $region20
        $region19: #{tpu_custom_call.1} parent=11 // pred_region
          _
        $region20: #{tpu_custom_call.1} parent=11 // pred_fallthru
          _
        // Predicated region
        $region21: #{tpu_custom_call.1} parent=11 // pred_check
          %p204 = pneg %p136
        $region22: #{tpu_custom_call.1} parent=11 // pred_check_branch
          %206 = sbr.rel (%p204) target = $region24
        $region23: #{tpu_custom_call.1} parent=11 // pred_region
          %s208 = ssub.s32 512, 512
          %209 = vsyncadd [#allocation6], %s208
          %s210 = sshll.u32 [#allocation7], 4
          %s211 = int_to_ptr.vmem [resolvable:$true] %s210
          %216 = dma.hbm_to_vmem [thread:$0]  %s4, 512, %s211, [#allocation6], 128, 128, 8
        $region24: #{tpu_custom_call.1} parent=11 // pred_fallthru
          _
        // Predicated region
        $region25: #{tpu_custom_call.1} parent=11 // pred_check
          %p217 = pneg %p157
        $region26: #{tpu_custom_call.1} parent=11 // pred_check_branch
          %219 = sbr.rel (%p217) target = $region28
        $region27: #{tpu_custom_call.1} parent=11 // pred_region
          _
        $region28: #{tpu_custom_call.1} parent=11 // pred_fallthru
          _
      $region12: #{tpu_custom_call.1} parent=5 // pred_fallthru
        _
      %p220 = scmp.lt.s32.totalorder %s21, 2
      // Predicated region
      $region29: #{tpu_custom_call.1} parent=5 // pred_check
        %p221 = pneg %p220
      $region30: #{tpu_custom_call.1} parent=5 // pred_check_branch
        %223 = sbr.rel (%p221) target = $region32
      $region31: #{tpu_custom_call.1} parent=5 // pred_region
        // Predicated region
        $region33: #{tpu_custom_call.1} parent=31 // pred_check
          %p224 = pneg %p41
        $region34: #{tpu_custom_call.1} parent=31 // pred_check_branch
          %226 = sbr.rel (%p224) target = $region36
        $region35: #{tpu_custom_call.1} parent=31 // pred_region
          %s227 = sand.u32 %s31, 1
          %s228 = scalar_lea.sflag [#allocation3], %s227
          %s229 = sand.u32 %s31, 1
          %s230 = smul.addr %s229, 8
          %s231 = scalar_lea.vmem [#allocation2], %s230
          %s233 = ssub.s32 128, 128
          %234 = vsyncadd %s228, %s233
          %s235 = smul.addr %s21, 128
          %s236 = scalar_lea.hbm %s0, %s235
          %s238 = sshll.u32 %s231, 4
          %s239 = int_to_ptr.vmem [resolvable:$true] %s238
          %241 = dma.hbm_to_vmem [thread:$0]  %s236, 128, %s239, %s228
        $region36: #{tpu_custom_call.1} parent=31 // pred_fallthru
          _
        // Predicated region
        $region37: #{tpu_custom_call.1} parent=31 // pred_check
          %p242 = pneg %p67
        $region38: #{tpu_custom_call.1} parent=31 // pred_check_branch
          %244 = sbr.rel (%p242) target = $region40
        $region39: #{tpu_custom_call.1} parent=31 // pred_region
          %s245 = sand.u32 %s21, 1
          %s246 = scalar_lea.sflag [#allocation6], %s245
          %s247 = sand.u32 %s57, 1
          %s248 = smul.addr %s247, 64
          %s249 = scalar_lea.vmem [#allocation5], %s248
          %s251 = ssub.s32 1024, 1024
          %252 = vsyncadd %s246, %s251
          %s253 = smul.addr %s21, 8
          %s254 = smul.addr %s253, 128
          %s255 = scalar_lea.hbm %s1, %s254
          %s256 = sshll.u32 %s249, 4
          %s257 = int_to_ptr.vmem [resolvable:$true] %s256
          %262 = dma.hbm_to_vmem [thread:$0]  %s255, 1024, %s257, %s246, 256, 256, 16
        $region40: #{tpu_custom_call.1} parent=31 // pred_fallthru
          _
      $region32: #{tpu_custom_call.1} parent=5 // pred_fallthru
        _
      %p263 = scmp.le.s32.totalorder 1, %s21
      %p264 = scmp.lt.s32.totalorder %s21, 3
      %p265 = pnand %p263, %p264
      %p266 = pneg %p265
      // Predicated region
      $region41: #{tpu_custom_call.1} parent=5 // pred_check
        _
      $region42: #{tpu_custom_call.1} parent=5 // pred_check_branch
        %268 = sbr.rel (%p265) target = $region44
      $region43: #{tpu_custom_call.1} parent=5 // pred_region
        %s269 = ssub.s32 %s21, 1
        %s270 = sand.u32 %s34, 1
        %s271 = scalar_lea.sflag [#allocation3], %s270
        %s272 = sand.u32 %s34, 1
        %s273 = smul.addr %s272, 8
        %s274 = scalar_lea.vmem [#allocation2], %s273
        // Predicated region
        $region45: #{tpu_custom_call.1} parent=43 // pred_check
          %p275 = pneg %p47
        $region46: #{tpu_custom_call.1} parent=43 // pred_check_branch
          %277 = sbr.rel (%p275) target = $region48
        $region47: #{tpu_custom_call.1} parent=43 // pred_region
          %278 = dma.done %s271, 128
        $region48: #{tpu_custom_call.1} parent=43 // pred_fallthru
          _
        %s279 = sand.u32 %s26, 1
        %s280 = scalar_lea.sflag [#allocation6], %s279
        %s281 = sand.u32 %s60, 1
        %s282 = smul.addr %s281, 64
        %s283 = scalar_lea.vmem [#allocation5], %s282
        // Predicated region
        $region49: #{tpu_custom_call.1} parent=43 // pred_check
          %p284 = pneg %p73
        $region50: #{tpu_custom_call.1} parent=43 // pred_check_branch
          %286 = sbr.rel (%p284) target = $region52
        $region51: #{tpu_custom_call.1} parent=43 // pred_region
          %287 = dma.done %s280, 1024
        $region52: #{tpu_custom_call.1} parent=43 // pred_fallthru
          _
        // Predicated region
        $region53: #{tpu_custom_call.1} parent=43 // pred_check
          %p288 = pneg %p136
        $region54: #{tpu_custom_call.1} parent=43 // pred_check_branch
          %290 = sbr.rel (%p288) target = $region56
        $region55: #{tpu_custom_call.1} parent=43 // pred_region
          %291 = dma.done [#allocation6], 512
        $region56: #{tpu_custom_call.1} parent=43 // pred_fallthru
          _
        %s292 = sand.u32 %s34, 1
        %s293 = scalar_lea.sflag [#allocation3], %s292
        %s294 = sand.u32 %s34, 1
        %s295 = smul.addr %s294, 8
        %s296 = scalar_lea.vmem [#allocation2], %s295
        %p297 = pneg %p47
        %p298 = pneg %p44
        %s299 = sand.u32 %s26, 1
        %s300 = scalar_lea.sflag [#allocation6], %s299
        %s301 = sand.u32 %s60, 1
        %s302 = smul.addr %s301, 64
        %s303 = scalar_lea.vmem [#allocation5], %s302
        %p304 = pneg %p73
        %p305 = pneg %p70
        %p306 = pneg %p94
        %p307 = pneg %p91
        %p308 = pneg %p115
        %p309 = pneg %p112
        %p310 = pneg %p136
        %p311 = pneg %p133
        %p312 = pneg %p157
        %p313 = pneg %p154
        %p314 = pneg %p183
        %p315 = pneg %p180
        %s316 = sand.u32 %s170, 1
        %s317 = scalar_lea.sflag [#allocation4], %s316
        %s318 = sand.u32 %s170, 1
        %s319 = smul.addr %s318, 64
        %s320 = scalar_lea.vmem [#allocation8], %s319
        %v321 = vld [vmem:[%s274] sm:$0xff]
        %v322 = vld [vmem:[%s283] sm:$0xff]
        %v323 = vld [vmem:[%s283 + $0x8] sm:$0xff]
        %v324 = vld [vmem:[%s283 + $0x10] sm:$0xff]
        %v325 = vld [vmem:[%s283 + $0x18] sm:$0xff]
        %v326 = vld [vmem:[%s283 + $0x20] sm:$0xff]
        %v327 = vld [vmem:[%s283 + $0x28] sm:$0xff]
        %v328 = vld [vmem:[%s283 + $0x30] sm:$0xff]
        %v329 = vld [vmem:[%s283 + $0x38] sm:$0xff]
        %v330 = vld [vmem:[%s2] sm:$0xff]
        %v331 = vld [vmem:[%s2 + $0x8] sm:$0xff]
        %v332 = vld [vmem:[%s2 + $0x10] sm:$0xff]
        %v333 = vld [vmem:[%s2 + $0x18] sm:$0xff]
        %v334 = vld [vmem:[%s3] sm:$0x1]
        %v336 = vlaneseq
        %v337 = vshrl.u32 %v336, 7
        %v338 = vsub.s32 0, %v337
        %v339 = vrot.slane %v334, %v338
        %vm341 = vcmask 261120
        %v343 = vsel %vm341, %v321, 0
        %345 = vmatprep.subr.mxu0 0.0
        %346 = vmatpush1.msra.mxu0 %v330
        %347 = vmatprep.subr.mxu0 0.0
        %348 = vmatpush1.msra.mxu0 %v331
        %349 = vmatprep.subr.mxu0 0.0
        %350 = vmatpush1.msra.mxu0 %v332
        %351 = vmatprep.subr.mxu0 0.0
        %352 = vmatpush1.msra.mxu0 %v333
        %353 = vmatprep.subr.mxu0 0.0
        %354 = vmatpush1.msra.mxu0 0.0
        %355 = vmatprep.subr.mxu0 0.0
        %356 = vmatpush1.msra.mxu0 0.0
        %357 = vmatprep.subr.mxu0 0.0
        %358 = vmatpush1.msra.mxu0 0.0
        %359 = vmatprep.subr.mxu0 0.0
        %360 = vmatpush1.msra.mxu0 0.0
        %361 = vmatprep.subr.mxu0 0.0
        %362 = vmatpush1.msra.mxu0 0.0
        %363 = vmatprep.subr.mxu0 0.0
        %364 = vmatpush1.msra.mxu0 0.0
        %365 = vmatprep.subr.mxu0 0.0
        %366 = vmatpush1.msra.mxu0 0.0
        %367 = vmatprep.subr.mxu0 0.0
        %368 = vmatpush1.msra.mxu0 0.0
        %369 = vmatprep.subr.mxu0 0.0
        %370 = vmatpush1.msra.mxu0 0.0
        %371 = vmatprep.subr.mxu0 0.0
        %372 = vmatpush1.msra.mxu0 0.0
        %373 = vmatprep.subr.mxu0 0.0
        %374 = vmatpush1.msra.mxu0 0.0
        %375 = vmatprep.subr.mxu0 0.0
        %376 = vmatpush1.msra.mxu0 0.0
        %377 = vmatprep.subr.mxu0 0.0
        %378 = vmatpush1.msra.mxu0 0.0
        %379 = vmatprep.subr.mxu0 0.0
        %380 = vmatpush1.msra.mxu0 0.0
        %381 = vmatprep.subr.mxu0 0.0
        %382 = vmatpush1.msra.mxu0 0.0
        %383 = vmatprep.subr.mxu0 0.0
        %384 = vmatpush1.msra.mxu0 0.0
        %385 = vmatprep.subr.mxu0 0.0
        %386 = vmatpush1.msra.mxu0 0.0
        %387 = vmatprep.subr.mxu0 0.0
        %388 = vmatpush1.msra.mxu0 0.0
        %389 = vmatprep.subr.mxu0 0.0
        %390 = vmatpush1.msra.mxu0 0.0
        %391 = vmatprep.subr.mxu0 0.0
        %392 = vmatpush1.msra.mxu0 0.0
        %393 = vmatprep.subr.mxu0 0.0
        %394 = vmatpush1.msra.mxu0 0.0
        %395 = vmatprep.subr.mxu0 0.0
        %396 = vmatpush1.msra.mxu0 0.0
        %397 = vmatprep.subr.mxu0 0.0
        %398 = vmatpush1.msra.mxu0 0.0
        %399 = vmatprep.subr.mxu0 0.0
        %400 = vmatpush1.msra.mxu0 0.0
        %401 = vmatprep.subr.mxu0 0.0
        %402 = vmatpush1.msra.mxu0 0.0
        %403 = vmatprep.subr.mxu0 0.0
        %404 = vmatpush1.msra.mxu0 0.0
        %405 = vmatprep.subr.mxu0 0.0
        %406 = vmatpush1.msra.mxu0 0.0
        %407 = vmatprep.subr.mxu0 0.0
        %408 = vmatpush1.msra.mxu0 0.0
        %409 = vmatprep.mubr.f32.mxu0 0.0
        %410 = vmatmul.mubr.f32.gmra.mrb[0].mxu0 %v343
        %v411 = vpop.f32.mrb[0].mxu0
        %v412 = vadd.f32 %v339, %v411
        %v413 = vpop.f32.mrb[0].mxu0
        %414 = vdwg.mxu0
        %v415 = vmul.f32 %v412, 0.35355338
        %v416 = vld [vmem:[#allocation7] sm:$0xff]
        %v417 = vld [vmem:[#allocation7 + $0x8] sm:$0xff]
        %v418 = vld [vmem:[#allocation7 + $0x10] sm:$0xff]
        %v419 = vld [vmem:[#allocation7 + $0x18] sm:$0xff]
        %v420 = vld [vmem:[%s5] sm:$0xff]
        %v421 = vld [vmem:[%s5 + $0x8] sm:$0xff]
        %v422 = vld [vmem:[%s5 + $0x10] sm:$0xff]
        %v423 = vld [vmem:[%s5 + $0x18] sm:$0xff]
        %425 = vset.pattern.permute.xlu0 0
        %426 = vperm.xlu0 %425, %v420
        %v427 = vpop.permute.xlu0 %426
        %430 = vset.pattern.permute.xlu0 0
        %431 = vperm.xlu0 %430, %v421
        %v432 = vpop.permute.xlu0 %431
        %435 = vset.pattern.permute.xlu0 0
        %436 = vperm.xlu0 %435, %v422
        %v437 = vpop.permute.xlu0 %436
        %440 = vset.pattern.permute.xlu0 0
        %441 = vperm.xlu0 %440, %v423
        %v442 = vpop.permute.xlu0 %441
        %v445 = vsel %vm341, %v416, 0
        %v448 = vsel %vm341, %v417, 0
        %v451 = vsel %vm341, %v418, 0
        %v454 = vsel %vm341, %v419, 0
        %456 = vmatprep.subr.mxu0 %v323
        %457 = vmatpush1.msra.mxu0 %v322
        %458 = vmatprep.subr.mxu0 %v325
        %459 = vmatpush1.msra.mxu0 %v324
        %460 = vmatprep.subr.mxu0 %v327
        %461 = vmatpush1.msra.mxu0 %v326
        %462 = vmatprep.subr.mxu0 %v329
        %463 = vmatpush1.msra.mxu0 %v328
        %464 = vmatprep.subr.mxu0 0.0
        %465 = vmatpush1.msra.mxu0 0.0
        %466 = vmatprep.subr.mxu0 0.0
        %467 = vmatpush1.msra.mxu0 0.0
        %468 = vmatprep.subr.mxu0 0.0
        %469 = vmatpush1.msra.mxu0 0.0
        %470 = vmatprep.subr.mxu0 0.0
        %471 = vmatpush1.msra.mxu0 0.0
        %472 = vmatprep.subr.mxu0 0.0
        %473 = vmatpush1.msra.mxu0 0.0
        %474 = vmatprep.subr.mxu0 0.0
        %475 = vmatpush1.msra.mxu0 0.0
        %476 = vmatprep.subr.mxu0 0.0
        %477 = vmatpush1.msra.mxu0 0.0
        %478 = vmatprep.subr.mxu0 0.0
        %479 = vmatpush1.msra.mxu0 0.0
        %480 = vmatprep.subr.mxu0 0.0
        %481 = vmatpush1.msra.mxu0 0.0
        %482 = vmatprep.subr.mxu0 0.0
        %483 = vmatpush1.msra.mxu0 0.0
        %484 = vmatprep.subr.mxu0 0.0
        %485 = vmatpush1.msra.mxu0 0.0
        %486 = vmatprep.subr.mxu0 0.0
        %487 = vmatpush1.msra.mxu0 0.0
        %488 = vmatprep.subr.mxu0 0.0
        %489 = vmatpush1.msra.mxu0 0.0
        %490 = vmatprep.subr.mxu0 0.0
        %491 = vmatpush1.msra.mxu0 0.0
        %492 = vmatprep.subr.mxu0 0.0
        %493 = vmatpush1.msra.mxu0 0.0
        %494 = vmatprep.subr.mxu0 0.0
        %495 = vmatpush1.msra.mxu0 0.0
        %496 = vmatprep.subr.mxu0 0.0
        %497 = vmatpush1.msra.mxu0 0.0
        %498 = vmatprep.subr.mxu0 0.0
        %499 = vmatpush1.msra.mxu0 0.0
        %500 = vmatprep.subr.mxu0 0.0
        %501 = vmatpush1.msra.mxu0 0.0
        %502 = vmatprep.subr.mxu0 0.0
        %503 = vmatpush1.msra.mxu0 0.0
        %504 = vmatprep.subr.mxu0 0.0
        %505 = vmatpush1.msra.mxu0 0.0
        %506 = vmatprep.subr.mxu0 0.0
        %507 = vmatpush1.msra.mxu0 0.0
        %508 = vmatprep.subr.mxu0 0.0
        %509 = vmatpush1.msra.mxu0 0.0
        %510 = vmatprep.subr.mxu0 0.0
        %511 = vmatpush1.msra.mxu0 0.0
        %512 = vmatprep.subr.mxu0 0.0
        %513 = vmatpush1.msra.mxu0 0.0
        %514 = vmatprep.subr.mxu0 0.0
        %515 = vmatpush1.msra.mxu0 0.0
        %516 = vmatprep.subr.mxu0 0.0
        %517 = vmatpush1.msra.mxu0 0.0
        %518 = vmatprep.subr.mxu0 0.0
        %519 = vmatpush1.msra.mxu0 0.0
        %520 = vmatprep.mubr.f32.mxu0 0.0
        %521 = vmatmul.mubr.f32.gmra.mrb[0].mxu0 %v445
        %v522 = vpop.f32.mrb[0].mxu0
        %v523 = vadd.f32 %v427, %v522
        %v524 = vpop.f32.mrb[0].mxu0
        %v525 = vadd.f32 %v427, %v524
        %526 = vmatprep.mubr.f32.mxu0 0.0
        %527 = vmatmul.mubr.f32.gmra.mrb[0].mxu0 %v448
        %v528 = vpop.f32.mrb[0].mxu0
        %v529 = vadd.f32 %v432, %v528
        %v530 = vpop.f32.mrb[0].mxu0
        %v531 = vadd.f32 %v432, %v530
        %532 = vmatprep.mubr.f32.mxu0 0.0
        %533 = vmatmul.mubr.f32.gmra.mrb[0].mxu0 %v451
        %v534 = vpop.f32.mrb[0].mxu0
        %v535 = vadd.f32 %v437, %v534
        %v536 = vpop.f32.mrb[0].mxu0
        %v537 = vadd.f32 %v437, %v536
        %538 = vmatprep.mubr.f32.mxu0 0.0
        %539 = vmatmul.mubr.f32.gmra.mrb[0].mxu0 %v454
        %v540 = vpop.f32.mrb[0].mxu0
        %v541 = vadd.f32 %v442, %v540
        %v542 = vpop.f32.mrb[0].mxu0
        %v543 = vadd.f32 %v442, %v542
        %544 = vdwg.mxu0
        %vm545 = vcmask 64512
        %v547 = vsel %vm545, %v415, 0
        %549 = vmatprep.subr.mxu0 %v525
        %550 = vmatpush1.msra.mxu0 %v523
        %551 = vmatprep.subr.mxu0 0.0
        %552 = vmatpush1.msra.mxu0 0.0
        %553 = vmatprep.subr.mxu0 0.0
        %554 = vmatpush1.msra.mxu0 0.0
        %555 = vmatprep.subr.mxu0 0.0
        %556 = vmatpush1.msra.mxu0 0.0
        %557 = vmatprep.subr.mxu0 0.0
        %558 = vmatpush1.msra.mxu0 0.0
        %559 = vmatprep.subr.mxu0 0.0
        %560 = vmatpush1.msra.mxu0 0.0
        %561 = vmatprep.subr.mxu0 0.0
        %562 = vmatpush1.msra.mxu0 0.0
        %563 = vmatprep.subr.mxu0 0.0
        %564 = vmatpush1.msra.mxu0 0.0
        %565 = vmatprep.subr.mxu0 0.0
        %566 = vmatpush1.msra.mxu0 0.0
        %567 = vmatprep.subr.mxu0 0.0
        %568 = vmatpush1.msra.mxu0 0.0
        %569 = vmatprep.subr.mxu0 0.0
        %570 = vmatpush1.msra.mxu0 0.0
        %571 = vmatprep.subr.mxu0 0.0
        %572 = vmatpush1.msra.mxu0 0.0
        %573 = vmatprep.subr.mxu0 0.0
        %574 = vmatpush1.msra.mxu0 0.0
        %575 = vmatprep.subr.mxu0 0.0
        %576 = vmatpush1.msra.mxu0 0.0
        %577 = vmatprep.subr.mxu0 0.0
        %578 = vmatpush1.msra.mxu0 0.0
        %579 = vmatprep.subr.mxu0 0.0
        %580 = vmatpush1.msra.mxu0 0.0
        %581 = vmatprep.subr.mxu0 0.0
        %582 = vmatpush1.msra.mxu0 0.0
        %583 = vmatprep.subr.mxu0 0.0
        %584 = vmatpush1.msra.mxu0 0.0
        %585 = vmatprep.subr.mxu0 0.0
        %586 = vmatpush1.msra.mxu0 0.0
        %587 = vmatprep.subr.mxu0 0.0
        %588 = vmatpush1.msra.mxu0 0.0
        %589 = vmatprep.subr.mxu0 0.0
        %590 = vmatpush1.msra.mxu0 0.0
        %591 = vmatprep.subr.mxu0 0.0
        %592 = vmatpush1.msra.mxu0 0.0
        %593 = vmatprep.subr.mxu0 0.0
        %594 = vmatpush1.msra.mxu0 0.0
        %595 = vmatprep.subr.mxu0 0.0
        %596 = vmatpush1.msra.mxu0 0.0
        %597 = vmatprep.subr.mxu0 0.0
        %598 = vmatpush1.msra.mxu0 0.0
        %599 = vmatprep.subr.mxu0 0.0
        %600 = vmatpush1.msra.mxu0 0.0
        %601 = vmatprep.subr.mxu0 0.0
        %602 = vmatpush1.msra.mxu0 0.0
        %603 = vmatprep.subr.mxu0 0.0
        %604 = vmatpush1.msra.mxu0 0.0
        %605 = vmatprep.subr.mxu0 0.0
        %606 = vmatpush1.msra.mxu0 0.0
        %607 = vmatprep.subr.mxu0 0.0
        %608 = vmatpush1.msra.mxu0 0.0
        %609 = vmatprep.subr.mxu0 0.0
        %610 = vmatpush1.msra.mxu0 0.0
        %611 = vmatprep.subr.mxu0 0.0
        %612 = vmatpush1.msra.mxu0 0.0
        %613 = vmatprep.mubr.f32.mxu0 0.0
        %614 = vmatmul.mubr.f32.gmra.mrb[0].mxu0 %v547
        %v615 = vpop.f32.mrb[0].mxu0
        %v616 = vadd.f32 0.0, %v615
        %v617 = vpop.f32.mrb[0].mxu0
        %v618 = vadd.f32 0.0, %v617
        %619 = vdwg.mxu0
        %620 = vrot.lane.b32.xlu0 %v415, 120
        %v621 = vpop.permute.xlu0 %620
        %v622 = vsel %vm545, %v621, 0
        %624 = vmatprep.subr.mxu0 %v531
        %625 = vmatpush1.msra.mxu0 %v529
        %626 = vmatprep.subr.mxu0 0.0
        %627 = vmatpush1.msra.mxu0 0.0
        %628 = vmatprep.subr.mxu0 0.0
        %629 = vmatpush1.msra.mxu0 0.0
        %630 = vmatprep.subr.mxu0 0.0
        %631 = vmatpush1.msra.mxu0 0.0
        %632 = vmatprep.subr.mxu0 0.0
        %633 = vmatpush1.msra.mxu0 0.0
        %634 = vmatprep.subr.mxu0 0.0
        %635 = vmatpush1.msra.mxu0 0.0
        %636 = vmatprep.subr.mxu0 0.0
        %637 = vmatpush1.msra.mxu0 0.0
        %638 = vmatprep.subr.mxu0 0.0
        %639 = vmatpush1.msra.mxu0 0.0
        %640 = vmatprep.subr.mxu0 0.0
        %641 = vmatpush1.msra.mxu0 0.0
        %642 = vmatprep.subr.mxu0 0.0
        %643 = vmatpush1.msra.mxu0 0.0
        %644 = vmatprep.subr.mxu0 0.0
        %645 = vmatpush1.msra.mxu0 0.0
        %646 = vmatprep.subr.mxu0 0.0
        %647 = vmatpush1.msra.mxu0 0.0
        %648 = vmatprep.subr.mxu0 0.0
        %649 = vmatpush1.msra.mxu0 0.0
        %650 = vmatprep.subr.mxu0 0.0
        %651 = vmatpush1.msra.mxu0 0.0
        %652 = vmatprep.subr.mxu0 0.0
        %653 = vmatpush1.msra.mxu0 0.0
        %654 = vmatprep.subr.mxu0 0.0
        %655 = vmatpush1.msra.mxu0 0.0
        %656 = vmatprep.subr.mxu0 0.0
        %657 = vmatpush1.msra.mxu0 0.0
        %658 = vmatprep.subr.mxu0 0.0
        %659 = vmatpush1.msra.mxu0 0.0
        %660 = vmatprep.subr.mxu0 0.0
        %661 = vmatpush1.msra.mxu0 0.0
        %662 = vmatprep.subr.mxu0 0.0
        %663 = vmatpush1.msra.mxu0 0.0
        %664 = vmatprep.subr.mxu0 0.0
        %665 = vmatpush1.msra.mxu0 0.0
        %666 = vmatprep.subr.mxu0 0.0
        %667 = vmatpush1.msra.mxu0 0.0
        %668 = vmatprep.subr.mxu0 0.0
        %669 = vmatpush1.msra.mxu0 0.0
        %670 = vmatprep.subr.mxu0 0.0
        %671 = vmatpush1.msra.mxu0 0.0
        %672 = vmatprep.subr.mxu0 0.0
        %673 = vmatpush1.msra.mxu0 0.0
        %674 = vmatprep.subr.mxu0 0.0
        %675 = vmatpush1.msra.mxu0 0.0
        %676 = vmatprep.subr.mxu0 0.0
        %677 = vmatpush1.msra.mxu0 0.0
        %678 = vmatprep.subr.mxu0 0.0
        %679 = vmatpush1.msra.mxu0 0.0
        %680 = vmatprep.subr.mxu0 0.0
        %681 = vmatpush1.msra.mxu0 0.0
        %682 = vmatprep.subr.mxu0 0.0
        %683 = vmatpush1.msra.mxu0 0.0
        %684 = vmatprep.subr.mxu0 0.0
        %685 = vmatpush1.msra.mxu0 0.0
        %686 = vmatprep.subr.mxu0 0.0
        %687 = vmatpush1.msra.mxu0 0.0
        %688 = vmatprep.mubr.f32.mxu0 0.0
        %689 = vmatmul.mubr.f32.gmra.mrb[0].mxu0 %v622
        %v690 = vpop.f32.mrb[0].mxu0
        %v691 = vadd.f32 0.0, %v690
        %v692 = vpop.f32.mrb[0].mxu0
        %v693 = vadd.f32 0.0, %v692
        %694 = vdwg.mxu0
        %695 = vrot.lane.b32.xlu0 %v415, 112
        %v696 = vpop.permute.xlu0 %695
        %v697 = vsel %vm545, %v696, 0
        %699 = vmatprep.subr.mxu0 %v537
        %700 = vmatpush1.msra.mxu0 %v535
        %701 = vmatprep.subr.mxu0 0.0
        %702 = vmatpush1.msra.mxu0 0.0
        %703 = vmatprep.subr.mxu0 0.0
        %704 = vmatpush1.msra.mxu0 0.0
        %705 = vmatprep.subr.mxu0 0.0
        %706 = vmatpush1.msra.mxu0 0.0
        %707 = vmatprep.subr.mxu0 0.0
        %708 = vmatpush1.msra.mxu0 0.0
        %709 = vmatprep.subr.mxu0 0.0
        %710 = vmatpush1.msra.mxu0 0.0
        %711 = vmatprep.subr.mxu0 0.0
        %712 = vmatpush1.msra.mxu0 0.0
        %713 = vmatprep.subr.mxu0 0.0
        %714 = vmatpush1.msra.mxu0 0.0
        %715 = vmatprep.subr.mxu0 0.0
        %716 = vmatpush1.msra.mxu0 0.0
        %717 = vmatprep.subr.mxu0 0.0
        %718 = vmatpush1.msra.mxu0 0.0
        %719 = vmatprep.subr.mxu0 0.0
        %720 = vmatpush1.msra.mxu0 0.0
        %721 = vmatprep.subr.mxu0 0.0
        %722 = vmatpush1.msra.mxu0 0.0
        %723 = vmatprep.subr.mxu0 0.0
        %724 = vmatpush1.msra.mxu0 0.0
        %725 = vmatprep.subr.mxu0 0.0
        %726 = vmatpush1.msra.mxu0 0.0
        %727 = vmatprep.subr.mxu0 0.0
        %728 = vmatpush1.msra.mxu0 0.0
        %729 = vmatprep.subr.mxu0 0.0
        %730 = vmatpush1.msra.mxu0 0.0
        %731 = vmatprep.subr.mxu0 0.0
        %732 = vmatpush1.msra.mxu0 0.0
        %733 = vmatprep.subr.mxu0 0.0
        %734 = vmatpush1.msra.mxu0 0.0
        %735 = vmatprep.subr.mxu0 0.0
        %736 = vmatpush1.msra.mxu0 0.0
        %737 = vmatprep.subr.mxu0 0.0
        %738 = vmatpush1.msra.mxu0 0.0
        %739 = vmatprep.subr.mxu0 0.0
        %740 = vmatpush1.msra.mxu0 0.0
        %741 = vmatprep.subr.mxu0 0.0
        %742 = vmatpush1.msra.mxu0 0.0
        %743 = vmatprep.subr.mxu0 0.0
        %744 = vmatpush1.msra.mxu0 0.0
        %745 = vmatprep.subr.mxu0 0.0
        %746 = vmatpush1.msra.mxu0 0.0
        %747 = vmatprep.subr.mxu0 0.0
        %748 = vmatpush1.msra.mxu0 0.0
        %749 = vmatprep.subr.mxu0 0.0
        %750 = vmatpush1.msra.mxu0 0.0
        %751 = vmatprep.subr.mxu0 0.0
        %752 = vmatpush1.msra.mxu0 0.0
        %753 = vmatprep.subr.mxu0 0.0
        %754 = vmatpush1.msra.mxu0 0.0
        %755 = vmatprep.subr.mxu0 0.0
        %756 = vmatpush1.msra.mxu0 0.0
        %757 = vmatprep.subr.mxu0 0.0
        %758 = vmatpush1.msra.mxu0 0.0
        %759 = vmatprep.subr.mxu0 0.0
        %760 = vmatpush1.msra.mxu0 0.0
        %761 = vmatprep.subr.mxu0 0.0
        %762 = vmatpush1.msra.mxu0 0.0
        %763 = vmatprep.mubr.f32.mxu0 0.0
        %764 = vmatmul.mubr.f32.gmra.mrb[0].mxu0 %v697
        %v765 = vpop.f32.mrb[0].mxu0
        %v766 = vadd.f32 0.0, %v765
        %v767 = vpop.f32.mrb[0].mxu0
        %v768 = vadd.f32 0.0, %v767
        %769 = vdwg.mxu0
        %770 = vrot.lane.b32.xlu0 %v415, 104
        %v771 = vpop.permute.xlu0 %770
        %v772 = vsel %vm545, %v771, 0
        %774 = vmatprep.subr.mxu0 %v543
        %775 = vmatpush1.msra.mxu0 %v541
        %776 = vmatprep.subr.mxu0 0.0
        %777 = vmatpush1.msra.mxu0 0.0
        %778 = vmatprep.subr.mxu0 0.0
        %779 = vmatpush1.msra.mxu0 0.0
        %780 = vmatprep.subr.mxu0 0.0
        %781 = vmatpush1.msra.mxu0 0.0
        %782 = vmatprep.subr.mxu0 0.0
        %783 = vmatpush1.msra.mxu0 0.0
        %784 = vmatprep.subr.mxu0 0.0
        %785 = vmatpush1.msra.mxu0 0.0
        %786 = vmatprep.subr.mxu0 0.0
        %787 = vmatpush1.msra.mxu0 0.0
        %788 = vmatprep.subr.mxu0 0.0
        %789 = vmatpush1.msra.mxu0 0.0
        %790 = vmatprep.subr.mxu0 0.0
        %791 = vmatpush1.msra.mxu0 0.0
        %792 = vmatprep.subr.mxu0 0.0
        %793 = vmatpush1.msra.mxu0 0.0
        %794 = vmatprep.subr.mxu0 0.0
        %795 = vmatpush1.msra.mxu0 0.0
        %796 = vmatprep.subr.mxu0 0.0
        %797 = vmatpush1.msra.mxu0 0.0
        %798 = vmatprep.subr.mxu0 0.0
        %799 = vmatpush1.msra.mxu0 0.0
        %800 = vmatprep.subr.mxu0 0.0
        %801 = vmatpush1.msra.mxu0 0.0
        %802 = vmatprep.subr.mxu0 0.0
        %803 = vmatpush1.msra.mxu0 0.0
        %804 = vmatprep.subr.mxu0 0.0
        %805 = vmatpush1.msra.mxu0 0.0
        %806 = vmatprep.subr.mxu0 0.0
        %807 = vmatpush1.msra.mxu0 0.0
        %808 = vmatprep.subr.mxu0 0.0
        %809 = vmatpush1.msra.mxu0 0.0
        %810 = vmatprep.subr.mxu0 0.0
        %811 = vmatpush1.msra.mxu0 0.0
        %812 = vmatprep.subr.mxu0 0.0
        %813 = vmatpush1.msra.mxu0 0.0
        %814 = vmatprep.subr.mxu0 0.0
        %815 = vmatpush1.msra.mxu0 0.0
        %816 = vmatprep.subr.mxu0 0.0
        %817 = vmatpush1.msra.mxu0 0.0
        %818 = vmatprep.subr.mxu0 0.0
        %819 = vmatpush1.msra.mxu0 0.0
        %820 = vmatprep.subr.mxu0 0.0
        %821 = vmatpush1.msra.mxu0 0.0
        %822 = vmatprep.subr.mxu0 0.0
        %823 = vmatpush1.msra.mxu0 0.0
        %824 = vmatprep.subr.mxu0 0.0
        %825 = vmatpush1.msra.mxu0 0.0
        %826 = vmatprep.subr.mxu0 0.0
        %827 = vmatpush1.msra.mxu0 0.0
        %828 = vmatprep.subr.mxu0 0.0
        %829 = vmatpush1.msra.mxu0 0.0
        %830 = vmatprep.subr.mxu0 0.0
        %831 = vmatpush1.msra.mxu0 0.0
        %832 = vmatprep.subr.mxu0 0.0
        %833 = vmatpush1.msra.mxu0 0.0
        %834 = vmatprep.subr.mxu0 0.0
        %835 = vmatpush1.msra.mxu0 0.0
        %836 = vmatprep.subr.mxu0 0.0
        %837 = vmatpush1.msra.mxu0 0.0
        %838 = vmatprep.mubr.f32.mxu0 0.0
        %839 = vmatmul.mubr.f32.gmra.mrb[0].mxu0 %v772
        %v840 = vpop.f32.mrb[0].mxu0
        %v841 = vadd.f32 0.0, %v840
        %v842 = vpop.f32.mrb[0].mxu0
        %v843 = vadd.f32 0.0, %v842
        %844 = vdwg.mxu0
        %v845 = vmax.f32 %v616, %v766
        %v846 = vmax.f32 %v618, %v768
        %v847 = vmax.f32 %v691, %v841
        %v848 = vmax.f32 %v693, %v843
        %v849 = vmax.f32 %v845, %v846
        %v850 = vmax.f32 %v847, %v848
        %v851 = vmax.f32 %v849, %v850
        %852 = vmax.xlane.f32.xlu0 %v851
        %v853 = vpop.xlane.xlu0 %852
        %v854 = vsub.f32 %v616, %v853
        %v855 = vsub.f32 %v618, %v853
        %v856 = vsub.f32 %v691, %v853
        %v857 = vsub.f32 %v693, %v853
        %v858 = vsub.f32 %v766, %v853
        %v859 = vsub.f32 %v768, %v853
        %v860 = vsub.f32 %v841, %v853
        %v861 = vsub.f32 %v843, %v853
        %v862 = vmul.f32 %v854, 1.442695
        %v863 = vpow.pop %v862
        %v864 = vmul.f32 %v855, 1.442695
        %v865 = vpow.pop %v864
        %v866 = vmul.f32 %v856, 1.442695
        %v867 = vpow.pop %v866
        %v868 = vmul.f32 %v857, 1.442695
        %v869 = vpow.pop %v868
        %v870 = vmul.f32 %v858, 1.442695
        %v871 = vpow.pop %v870
        %v872 = vmul.f32 %v859, 1.442695
        %v873 = vpow.pop %v872
        %v874 = vmul.f32 %v860, 1.442695
        %v875 = vpow.pop %v874
        %v876 = vmul.f32 %v861, 1.442695
        %v877 = vpow.pop %v876
        %v878 = vadd.f32 %v863, %v865
        %v879 = vadd.f32 %v878, %v867
        %v880 = vadd.f32 %v879, %v869
        %v881 = vadd.f32 %v880, %v871
        %v882 = vadd.f32 %v881, %v873
        %v883 = vadd.f32 %v882, %v875
        %v884 = vadd.f32 %v883, %v877
        %885 = vadd.xlane.f32.xlu0 %v884
        %v886 = vpop.xlane.xlu0 %885
        %v887 = vrcp.pop %v886
        %v888 = vmul.f32 %v863, %v887
        %v889 = vmul.f32 %v865, %v887
        %v890 = vmul.f32 %v867, %v887
        %v891 = vmul.f32 %v869, %v887
        %v892 = vmul.f32 %v871, %v887
        %v893 = vmul.f32 %v873, %v887
        %v894 = vmul.f32 %v875, %v887
        %v895 = vmul.f32 %v877, %v887
        %896 = vst [vmem:[%s320] sm:$0xff] %v888
        %897 = vst [vmem:[%s320 + $0x8] sm:$0xff] %v889
        %898 = vst [vmem:[%s320 + $0x10] sm:$0xff] %v890
        %899 = vst [vmem:[%s320 + $0x18] sm:$0xff] %v891
        %900 = vst [vmem:[%s320 + $0x20] sm:$0xff] %v892
        %901 = vst [vmem:[%s320 + $0x28] sm:$0xff] %v893
        %902 = vst [vmem:[%s320 + $0x30] sm:$0xff] %v894
        %903 = vst [vmem:[%s320 + $0x38] sm:$0xff] %v895
        %s904 = sand.u32 %s170, 1
        %s905 = scalar_lea.sflag [#allocation4], %s904
        %s906 = sand.u32 %s170, 1
        %s907 = smul.addr %s906, 64
        %s908 = scalar_lea.vmem [#allocation8], %s907
        // Predicated region
        $region57: #{tpu_custom_call.1} parent=43 // pred_check
          %p909 = pneg %p180
        $region58: #{tpu_custom_call.1} parent=43 // pred_check_branch
          %911 = sbr.rel (%p909) target = $region60
        $region59: #{tpu_custom_call.1} parent=43 // pred_region
          %s913 = ssub.s32 1024, 1024
          %914 = vsyncadd %s905, %s913
          %s915 = smul.addr %s26, 8
          %s916 = smul.addr %s915, 128
          %s917 = scalar_lea.hbm %s6, %s916
          %s919 = sshll.u32 %s908, 4
          %s920 = int_to_ptr.vmem [resolvable:$true] %s919
          %922 = dma.vmem_to_hbm [thread:$0]  %s920, 1024, %s917, %s905
        $region60: #{tpu_custom_call.1} parent=43 // pred_fallthru
          _
      $region44: #{tpu_custom_call.1} parent=5 // pred_fallthru
        _
      %p923 = scmp.le.s32.totalorder 2, %s21
      // Predicated region
      $region61: #{tpu_custom_call.1} parent=5 // pred_check
        %p924 = pneg %p923
      $region62: #{tpu_custom_call.1} parent=5 // pred_check_branch
        %926 = sbr.rel (%p924) target = $region64
      $region63: #{tpu_custom_call.1} parent=5 // pred_region
        %s927 = ssub.s32 %s21, 2
        // Predicated region
        $region65: #{tpu_custom_call.1} parent=63 // pred_check
          %p928 = pneg %p186
        $region66: #{tpu_custom_call.1} parent=63 // pred_check_branch
          %930 = sbr.rel (%p928) target = $region68
        $region67: #{tpu_custom_call.1} parent=63 // pred_region
          %s931 = sand.u32 %s171, 1
          %s932 = scalar_lea.sflag [#allocation4], %s931
          %s933 = sand.u32 %s171, 1
          %s934 = smul.addr %s933, 64
          %s935 = scalar_lea.vmem [#allocation8], %s934
          %936 = dma.done %s932, 1024
        $region68: #{tpu_custom_call.1} parent=63 // pred_fallthru
          _
      $region64: #{tpu_custom_call.1} parent=5 // pred_fallthru
        _
    $region6: #{tpu_custom_call.1} parent=1 // loop_footer
      %s25 = sadd.s32 1, %s21
    $region7: #{tpu_custom_call.1} parent=1 // loop_footer_branch
      %20 = sbr.rel target = $region3
    $region8: #{tpu_custom_call.1} parent=1 // loop_exit
      _
    %937 = vsyncpa [#allocation3], 1
    %s938 = scalar_lea.sflag [#allocation3], 1
    %939 = vsyncpa %s938, 1
    %940 = vsyncpa [#allocation6], 1
    %s941 = scalar_lea.sflag [#allocation6], 1
    %942 = vsyncpa %s941, 1
    %943 = vsyncpa [#allocation4], 1
    %s944 = scalar_lea.sflag [#allocation4], 1
    %945 = vsyncpa %s944, 1

</llo_original>
